<compile_context>
chip_gen: v6e
topology: v6e:2x2x1
jax: 0.10.0
libtpu: 0.0.40
codegen_flags: <defaults>
</compile_context>

<pallas_src>
import functools

import jax
import jax.numpy as jnp
from jax import lax
from jax.experimental import pallas as pl
from jax.experimental.pallas import tpu as pltpu

_MIB = 1 << 20


def _round_up(x, m):
    return ((x + m - 1) // m) * m


def _detect_num_cores():
    """2 for megacore chips (v7x/v4/v5p), 1 for single-TC v5e/v6e."""
    try:
        kind = jax.devices()[0].device_kind.lower()
    except Exception:
        return 2
    single_tc = ("v5e", "v5 lite", "v5litepod", "v6e", "v6 lite")
    return 1 if any(t in kind for t in single_tc) else 2


def _vmem_capacity_bytes():
    try:
        return int(pltpu.get_tpu_info().vmem_capacity_bytes)
    except Exception:
        return 64 * _MIB  # conservative: v7x per-core physical VMEM


def _focal_kernel(logits_ref, targets_ref, out_ref, acc_ref, *,
                  alpha, gamma, ignore_index, batch_size, tile_b):
    c = pl.program_id(0)            # core-split index (megacore)
    i = pl.program_id(1)            # tile index within this core's sweep
    n_inner = pl.num_programs(1)

    @pl.when(i == 0)
    def _():
        acc_ref[...] = jnp.zeros_like(acc_ref)

    logits = logits_ref[...].astype(jnp.float32)       # (TB, C) f32 math
    tgt = targets_ref[...]                             # (TB, 1) int32

    # Numerically stable softmax pieces: exactly one full-tile transcendental.
    m = jnp.max(logits, axis=-1, keepdims=True)                    # (TB, 1)
    e = jnp.exp(logits - m)                                        # (TB, C)
    denom = jnp.sum(e, axis=-1, keepdims=True)                     # (TB, 1)

    # Fused target gather: select from the exp we already have. cls_ids is a
    # (1, C) row (sublane-broadcast in the compare) — no full-tile iota per step.
    cls_ids = lax.broadcasted_iota(jnp.int32, (1, logits.shape[1]), 1)
    num = jnp.sum(jnp.where(cls_ids == tgt, e, 0.0),
                  axis=-1, keepdims=True)                          # (TB, 1)
    p_t = num * pl.reciprocal(denom, approx=True)                  # (TB, 1)

    # focal weight: specialize small integer gamma (avoids pow -> exp(log)).
    one_minus = jnp.maximum(1.0 - p_t, 0.0)
    g = float(gamma)
    if g.is_integer() and 0.0 <= g <= 8.0:
        w = jnp.ones_like(one_minus)
        for _ in range(int(g)):
            w = w * one_minus
    else:
        w = one_minus ** g
    loss = -alpha * w * jnp.log(p_t + 1e-8)                        # (TB, 1)

    # validity: in-range rows (ragged last block / core overhang) + ignore_index
    row_local = lax.broadcasted_iota(jnp.int32, (tile_b, 1), 0)
    row_global = (c * n_inner + i) * tile_b + row_local
    valid = row_global < batch_size
    if ignore_index is not None:
        valid = jnp.logical_and(valid, tgt != ignore_index)

    # jnp.where (not multiply) so NaN/Inf from garbage tail rows cannot leak in.
    masked = jnp.where(valid, loss, 0.0)                           # (TB, 1)

    # Tile-level reduction into a (1,1) VMEM accumulator (XLU sublane reduce).
    acc_ref[...] += jnp.sum(masked, axis=0, keepdims=True)

    @pl.when(i == n_inner - 1)
    def _():
        # Lane-dense (8,128) per-core output; JAX epilogue reads [0, 0].
        out_ref[...] = jnp.broadcast_to(acc_ref[...], out_ref.shape)


def focal_loss(logits, targets, *, alpha=1.0, gamma=2.0,
               reduction="mean", ignore_index=None,
               tile_b=None, num_cores=None):
    """Pallas implementation of FocalLoss.forward (reduction 'mean' or 'sum')."""
    B, C = logits.shape
    targets = targets.astype(jnp.int32)
    tgt2d = targets.reshape(B, 1)

    if num_cores is None:
        num_cores = _detect_num_cores()
    num_cores = max(1, int(num_cores))

    itemsize = jnp.dtype(logits.dtype).itemsize
    # sublane alignment of the batch tile: 8 rows for 32-bit, 16 for bf16.
    align = 8 if itemsize >= 4 else (16 if itemsize == 2 else 32)
    c_pad = _round_up(C, 128)                      # lane padding of logits block

    # --- generation-aware VMEM plan -------------------------------------------
    vmem_cap = _vmem_capacity_bytes()
    # VMEM bytes per batch row across both double-buffered input streams,
    # including lane padding: logits pad C->c_pad lanes, the (tile_b,1) int32
    # targets block pads to 128 lanes.
    row_bytes = 2 * (c_pad * itemsize + 128 * 4)
    work_budget = max(8 * _MIB, min(vmem_cap - 16 * _MIB, 96 * _MIB))
    max_tile = max(align, (work_budget // row_bytes) // align * align)

    if tile_b is None:
        tile_b = max_tile                          # biggest block that fits VMEM
    tile_b = max(align, (int(tile_b) // align) * align)
    tile_b = min(tile_b, max_tile, _round_up(B, align))

    n_tiles = pl.cdiv(B, tile_b)
    n_inner = pl.cdiv(n_tiles, num_cores)

    def in_map(c, i):
        # clamp so the overhang of the core-split never DMAs out of bounds
        # (those rows are masked out in-kernel anyway).
        return (jnp.minimum(c * n_inner + i, n_tiles - 1), 0)

    kernel = functools.partial(
        _focal_kernel, alpha=float(alpha), gamma=float(gamma),
        ignore_index=ignore_index, batch_size=B, tile_b=tile_b)

    # Explicit VMEM limit: never above physical VMEM (56 MiB cap on v7x's
    # 64 MiB, up to ~100 MiB on v5e/v6e's 128 MiB; v5e scoped default is 16 MiB).
    needed = tile_b * row_bytes + 8 * (8 * 128 * 4) + 2 * _MIB
    cap_limit = max(24 * _MIB, min(vmem_cap - 8 * _MIB, 100 * _MIB))
    vmem_limit = int(min(max(needed, 16 * _MIB), cap_limit))

    parts = pl.pallas_call(
        kernel,
        out_shape=jax.ShapeDtypeStruct((num_cores * 8, 128), jnp.float32),
        grid_spec=pltpu.PrefetchScalarGridSpec(
            num_scalar_prefetch=0,
            grid=(num_cores, n_inner),
            in_specs=[
                pl.BlockSpec((tile_b, C), in_map),
                pl.BlockSpec((tile_b, 1), in_map),
            ],
            out_specs=pl.BlockSpec((8, 128), lambda c, i: (c, 0)),
            scratch_shapes=[pltpu.VMEM((1, 1), jnp.float32)],
        ),
        compiler_params=pltpu.CompilerParams(
            dimension_semantics=("parallel", "arbitrary"),
            vmem_limit_bytes=vmem_limit),
    )(logits, tgt2d)

    # Per-core scalar lives at [0, 0] of each core's (8,128) block.
    total = jnp.sum(parts.reshape(num_cores, 8, 128)[:, 0, 0])

    # Valid-row count computed in plain JAX (B-length int32: negligible traffic).
    if ignore_index is not None:
        cnt = jnp.sum((targets != ignore_index).astype(jnp.float32))
    else:
        cnt = jnp.asarray(float(B), dtype=jnp.float32)

    if reduction == "mean":
        return jnp.where(cnt > 0, total / jnp.maximum(cnt, 1.0), 0.0)
    elif reduction == "sum":
        return total
    else:
        # TODO(synk): reduction='none' with boolean masking yields a dynamic
        # shape; not representable in JAX/Pallas without padding semantics.
        raise NotImplementedError("reduction='none' not supported")


def _focal_loss_ref(logits, targets, *, alpha=1.0, gamma=2.0,
                    reduction="mean", ignore_index=None):
    """Pure-JAX reference mirroring the PyTorch forward."""
    logits = logits.astype(jnp.float32)
    probs = jax.nn.softmax(logits, axis=-1)
    onehot = jax.nn.one_hot(targets, logits.shape[-1], dtype=jnp.float32)
    p_t = jnp.sum(probs * onehot, axis=-1)
    loss = -alpha * ((1.0 - p_t) ** gamma) * jnp.log(p_t + 1e-8)
    if ignore_index is not None:
        valid = (targets != ignore_index).astype(jnp.float32)
    else:
        valid = jnp.ones_like(loss)
    total = jnp.sum(loss * valid)
    cnt = jnp.sum(valid)
    if reduction == "mean":
        return jnp.where(cnt > 0, total / jnp.maximum(cnt, 1.0), 0.0)
    return total


if __name__ == "__main__":
    key = jax.random.PRNGKey(0)
    k1, k2, k3, k4 = jax.random.split(key, 4)

    # Tolerances are set for pl.reciprocal(approx=True) in the p_t gather
    # (per-row op; worst-case relative error well below 1e-2 on the loss).
    # test 1: plain mean reduction
    B, C = 16, 32
    logits = jax.random.normal(k1, (B, C), dtype=jnp.float32)
    targets = jax.random.randint(k2, (B,), 0, C, dtype=jnp.int32)
    out = jax.block_until_ready(
        focal_loss(logits, targets, alpha=1.0, gamma=2.0, reduction="mean"))
    ref = _focal_loss_ref(logits, targets, alpha=1.0, gamma=2.0, reduction="mean")
    assert jnp.allclose(out, ref, atol=1e-2, rtol=1e-2), (out, ref)

    # test 2: ragged batch (no wrapper padding) + ignore_index
    B2, C2 = 13, 32
    logits2 = jax.random.normal(k3, (B2, C2), dtype=jnp.float32)
    targets2 = jax.random.randint(k4, (B2,), 0, C2, dtype=jnp.int32)
    out2 = jax.block_until_ready(
        focal_loss(logits2, targets2, ignore_index=3, reduction="mean"))
    ref2 = _focal_loss_ref(logits2, targets2, ignore_index=3, reduction="mean")
    assert jnp.allclose(out2, ref2, atol=1e-2, rtol=1e-2), (out2, ref2)

    # test 3: bf16 logits in HBM (half the read traffic), f32 math in-kernel
    logits_bf16 = logits.astype(jnp.bfloat16)
    out3 = jax.block_until_ready(focal_loss(logits_bf16, targets, reduction="sum"))
    ref3 = _focal_loss_ref(logits_bf16, targets, reduction="sum")
    assert jnp.allclose(out3, ref3, atol=1e-1, rtol=1e-2), (out3, ref3)

    print("KERNEL_OK")
</pallas_src>

<mosaic_0001>
module attributes {stable_mosaic.version = 11 : i64} {
  func.func @_focal_kernel(%arg0: i32, %arg1: i32, %arg2: memref<16x32xf32, #tpu.memory_space<vmem>>, %arg3: memref<16x1xi32, #tpu.memory_space<vmem>>, %arg4: memref<8x128xf32, #tpu.memory_space<vmem>>, %arg5: memref<1x1xf32, #tpu.memory_space<vmem>>) attributes {dimension_semantics = [#tpu.dimension_semantics<parallel>, #tpu.dimension_semantics<arbitrary>], iteration_bounds = array<i64: 2, 1>, scalar_prefetch = 0 : i64, scratch_operands = 1 : i64, tpu.core_type = #tpu.core_type<tc>, window_params = [{transform_indices = @transform_0, window_bounds = array<i64: 16, 32>}, {transform_indices = @transform_1, window_bounds = array<i64: 16, 1>}, {transform_indices = @transform_2, window_bounds = array<i64: 8, 128>}]} {
    %c0_i32 = arith.constant 0 : i32
    %0 = arith.cmpi eq, %arg1, %c0_i32 : i32
    %1 = arith.extui %0 : i1 to i32
    %c0_i32_0 = arith.constant 0 : i32
    %2 = arith.cmpi ne, %1, %c0_i32_0 : i32
    scf.if %2 {
      %cst_21 = arith.constant 0.000000e+00 : f32
      %53 = vector.broadcast %cst_21 : f32 to vector<1x1xf32>
      %c0_22 = arith.constant 0 : index
      %c0_23 = arith.constant 0 : index
      %54 = vector.load %arg5[%c0_22, %c0_23] : memref<1x1xf32, #tpu.memory_space<vmem>>, vector<1x1xf32>
      tpu.vector_store %arg5[%c0_22, %c0_23], %53 {strides = array<i32>} : memref<1x1xf32, #tpu.memory_space<vmem>>, vector<1x1xf32>,
    } else {
    }
    %c0 = arith.constant 0 : index
    %c0_1 = arith.constant 0 : index
    %3 = vector.load %arg2[%c0, %c0_1] : memref<16x32xf32, #tpu.memory_space<vmem>>, vector<16x32xf32>
    %c0_2 = arith.constant 0 : index
    %c0_3 = arith.constant 0 : index
    %4 = vector.load %arg3[%c0_2, %c0_3] : memref<16x1xi32, #tpu.memory_space<vmem>>, vector<16x1xi32>
    %cst = arith.constant dense<0xFF800000> : vector<16xf32>
    %5 = vector.multi_reduction <maximumf>, %3, %cst [1] : vector<16x32xf32> to vector<16xf32>
    %6 = vector.shape_cast %5 : vector<16xf32> to vector<16x1xf32>
    %7 = vector.broadcast %6 : vector<16x1xf32> to vector<16x32xf32>
    %8 = arith.subf %3, %7 : vector<16x32xf32>
    %9 = math.exp %8 : vector<16x32xf32>
    %cst_4 = arith.constant dense<0.000000e+00> : vector<16xf32>
    %10 = vector.multi_reduction <add>, %9, %cst_4 [1] : vector<16x32xf32> to vector<16xf32>
    %11 = vector.shape_cast %10 : vector<16xf32> to vector<16x1xf32>
    %12 = tpu.iota {dimensions = array<i32: 1>} : vector<1x32xi32>
    %13 = vector.broadcast %12 : vector<1x32xi32> to vector<16x32xi32>
    %14 = vector.broadcast %4 : vector<16x1xi32> to vector<16x32xi32>
    %15 = arith.cmpi eq, %13, %14 : vector<16x32xi32>
    %cst_5 = arith.constant 0.000000e+00 : f32
    %16 = vector.broadcast %cst_5 : f32 to vector<16x32xf32>
    %17 = arith.select %15, %9, %16 : vector<16x32xi1>, vector<16x32xf32>
    %cst_6 = arith.constant dense<0.000000e+00> : vector<16xf32>
    %18 = vector.multi_reduction <add>, %17, %cst_6 [1] : vector<16x32xf32> to vector<16xf32>
    %19 = vector.shape_cast %18 : vector<16xf32> to vector<16x1xf32>
    %20 = tpu.reciprocal %11 {approx = true} : vector<16x1xf32> -> vector<16x1xf32>
    %21 = arith.mulf %19, %20 : vector<16x1xf32>
    %cst_7 = arith.constant 1.000000e+00 : f32
    %22 = vector.broadcast %cst_7 : f32 to vector<16x1xf32>
    %23 = arith.subf %22, %21 : vector<16x1xf32>
    %cst_8 = arith.constant 0.000000e+00 : f32
    %24 = vector.broadcast %cst_8 : f32 to vector<16x1xf32>
    %25 = arith.maximumf %23, %24 : vector<16x1xf32>
    %cst_9 = arith.constant 1.000000e+00 : f32
    %26 = vector.broadcast %cst_9 : f32 to vector<16x1xf32>
    %27 = arith.mulf %26, %25 : vector<16x1xf32>
    %28 = arith.mulf %27, %25 : vector<16x1xf32>
    %cst_10 = arith.constant -1.000000e+00 : f32
    %29 = vector.broadcast %cst_10 : f32 to vector<16x1xf32>
    %30 = arith.mulf %29, %28 : vector<16x1xf32>
    %cst_11 = arith.constant 9.99999993E-9 : f32
    %31 = vector.broadcast %cst_11 : f32 to vector<16x1xf32>
    %32 = arith.addf %21, %31 : vector<16x1xf32>
    %33 = math.log %32 : vector<16x1xf32>
    %34 = arith.mulf %30, %33 : vector<16x1xf32>
    %35 = tpu.iota {dimensions = array<i32: 0>} : vector<16x1xi32>
    %c1_i32 = arith.constant 1 : i32
    %36 = arith.muli %arg0, %c1_i32 : i32
    %37 = arith.addi %36, %arg1 : i32
    %c16_i32 = arith.constant 16 : i32
    %38 = arith.muli %37, %c16_i32 : i32
    %39 = vector.broadcast %38 : i32 to vector<16x1xi32>
    %40 = arith.addi %39, %35 : vector<16x1xi32>
    %c16_i32_12 = arith.constant 16 : i32
    %41 = vector.broadcast %c16_i32_12 : i32 to vector<16x1xi32>
    %42 = arith.cmpi slt, %40, %41 : vector<16x1xi32>
    %cst_13 = arith.constant 0.000000e+00 : f32
    %43 = vector.broadcast %cst_13 : f32 to vector<16x1xf32>
    %44 = arith.select %42, %34, %43 : vector<16x1xi1>, vector<16x1xf32>
    %c0_14 = arith.constant 0 : index
    %c0_15 = arith.constant 0 : index
    %45 = vector.load %arg5[%c0_14, %c0_15] : memref<1x1xf32, #tpu.memory_space<vmem>>, vector<1x1xf32>
    %cst_16 = arith.constant dense<0.000000e+00> : vector<1xf32>
    %46 = vector.multi_reduction <add>, %44, %cst_16 [0] : vector<16x1xf32> to vector<1xf32>
    %47 = vector.shape_cast %46 : vector<1xf32> to vector<1x1xf32>
    %48 = arith.addf %45, %47 : vector<1x1xf32>
    %c0_17 = arith.constant 0 : index
    %c0_18 = arith.constant 0 : index
    %49 = vector.load %arg5[%c0_17, %c0_18] : memref<1x1xf32, #tpu.memory_space<vmem>>, vector<1x1xf32>
    tpu.vector_store %arg5[%c0_17, %c0_18], %48 {strides = array<i32>} : memref<1x1xf32, #tpu.memory_space<vmem>>, vector<1x1xf32>,
    %c0_i32_19 = arith.constant 0 : i32
    %50 = arith.cmpi eq, %arg1, %c0_i32_19 : i32
    %51 = arith.extui %50 : i1 to i32
    %c0_i32_20 = arith.constant 0 : i32
    %52 = arith.cmpi ne, %51, %c0_i32_20 : i32
    scf.if %52 {
      %c0_21 = arith.constant 0 : index
      %c0_22 = arith.constant 0 : index
      %53 = vector.load %arg5[%c0_21, %c0_22] : memref<1x1xf32, #tpu.memory_space<vmem>>, vector<1x1xf32>
      %54 = vector.shape_cast %53 : vector<1x1xf32> to vector<1x1xf32>
      %55 = vector.broadcast %54 : vector<1x1xf32> to vector<8x128xf32>
      %c0_23 = arith.constant 0 : index
      %c0_24 = arith.constant 0 : index
      %56 = vector.load %arg4[%c0_23, %c0_24] : memref<8x128xf32, #tpu.memory_space<vmem>>, vector<8x128xf32>
      tpu.vector_store %arg4[%c0_23, %c0_24], %55 {strides = array<i32>} : memref<8x128xf32, #tpu.memory_space<vmem>>, vector<8x128xf32>,
    } else {
    }
    return
  }
  func.func @transform_0(%arg0: i32, %arg1: i32) -> (i32, i32) {
    %c1_i32 = arith.constant 1 : i32
    %0 = arith.muli %arg0, %c1_i32 : i32
    %1 = arith.addi %0, %arg1 : i32
    %c0_i32 = arith.constant 0 : i32
    %2 = arith.minsi %1, %c0_i32 : i32
    %c0_i32_0 = arith.constant 0 : i32
    %c0_i32_1 = arith.constant 0 : i32
    return %2, %c0_i32_0 : i32, i32
  }
  func.func @transform_1(%arg0: i32, %arg1: i32) -> (i32, i32) {
    %c1_i32 = arith.constant 1 : i32
    %0 = arith.muli %arg0, %c1_i32 : i32
    %1 = arith.addi %0, %arg1 : i32
    %c0_i32 = arith.constant 0 : i32
    %2 = arith.minsi %1, %c0_i32 : i32
    %c0_i32_0 = arith.constant 0 : i32
    %c0_i32_1 = arith.constant 0 : i32
    return %2, %c0_i32_0 : i32, i32
  }
  func.func @transform_2(%arg0: i32, %arg1: i32) -> (i32, i32) {
    %c0_i32 = arith.constant 0 : i32
    %c0_i32_0 = arith.constant 0 : i32
    return %arg0, %c0_i32 : i32, i32
  }
}

</mosaic_0001>

<llo_original>
// kernel: tpu_custom_call.1
$region0: #{tpu_custom_call.1}
  #allocation0 [shape = 'u32[]', space=smem, size = 0x4, offset = 0x4, fixed_abs, tag = 'smem constant byte address 0x4 - core index']
  #allocation1 [shape = 'u32[144,128]{1,0:T(1,128)}', space=vmem, size = 0x12000, scoped, tag = 'internal scratch']
  #allocation2 [shape = 'f32[1,1]{1,0:T(1,128)}', space=vmem, size = 0x200, scoped, tag = 'scratch operand']
  %s0 = inlined_call_operand.vmem [shape: f32[16,32], index: 0, kind: input, shape index: {}]
  %s1 = inlined_call_operand.vmem [shape: s32[16,1], index: 1, kind: input, shape index: {}]
  %s2 = inlined_call_operand.hbm [shape: f32[16,128], index: 2, kind: output, shape index: {}]
  %s3 = sld [smem:[#allocation0]]
  $region49: #{tpu_custom_call.1} parent=0
    _
  %s5 = ssub.s32 1, %s3
  %s6 = scalar_select 0, %s5, %s3
  $region1: #{tpu_custom_call.1} parent=0
    #allocation3 [shape = 'u8[8192]{0}', space=vmem, size = 0x2000, scoped, tag = 'output window, operand 0']
    #allocation4 [shape = 's32[2]{0}', space=sflag, size = 0x8, scoped, tag = 'scoped memory for tpu_custom_call.1']
    %7 = vsyncpa [#allocation4], 0
    %s8 = scalar_lea.sflag [#allocation4], 1
    %9 = vsyncpa %s8, 0
    loop: start=0, step=1, limit=4
    $region2: #{tpu_custom_call.1} parent=1 // loop_pre_header
      _
    $region3: #{tpu_custom_call.1} parent=1 // loop_header
      %s11 = sphi 0, %s15
      %p12 = scmp.ge.s32.totalorder %s11, 4
      %s18 = sphi 0, %s30
      %s19 = sphi 0, %s26
      %s20 = sphi 0, %s18
      %s21 = sphi 0, %s19
      %s22 = sphi 0, %s20
      %s23 = sphi 0, %s21
      %s39 = sphi 0, %s41
      %s42 = sphi 0, %s39
      %s43 = sphi 0, %s42
      %s59 = sphi 0, %s43
      %s71 = sphi 0, %s73
      %s74 = sphi 0, %s71
      %s75 = sphi 0, %s74
      %s91 = sphi 0, %s75
      %s97 = sphi 0, %s99
      %s100 = sphi 0, %s97
      %s101 = sphi 0, %s100
      %s117 = sphi 0, %s101
    $region4: #{tpu_custom_call.1} parent=1 // loop_header_branch
      %14 = sbr.rel (%p12) target = $region8
    $region5: #{tpu_custom_call.1} parent=1 // loop_body
      %s16 = ssub.s32 %s11, 1
      %s17 = ssub.s32 %s11, 2
      %s24 = sadd.s32 1, %s19
      %p25 = scmp.ge.s32.totalorder %s24, 1
      %s26 = scalar_select %p25, 0, %s24
      %s27 = sadd.s32 1, %s18
      %s28 = scalar_select %p25, %s27, %s18
      %p29 = scmp.ge.s32.totalorder %s28, 2
      %s30 = scalar_select %p29, 0, %s28
      %s31 = sadd.s32 %s18, %s19
      %p32 = scmp.lt.s32.totalorder %s31, 0
      %s33 = scalar_select %p32, %s31, 0
      %s34 = sadd.s32 %s30, %s26
      %p35 = scmp.lt.s32.totalorder %s34, 0
      %s36 = scalar_select %p35, %s34, 0
      %s37 = ssub.s32 %s33, %s36
      %p38 = scmp.eq.s32.totalorder %s37, 0
      %s40 = sadd.s32 %s39, 1
      %s41 = scalar_select %p38, %s39, %s40
      %p44 = pneg %p38
      %p45 = scmp.eq.s32.totalorder %s11, 1
      %p46 = por %p44, %p45
      %p47 = scmp.ne.s32.totalorder %s39, %s42
      %p48 = scmp.eq.s32.totalorder %s11, 0
      %p49 = por %p47, %p48
      %p50 = scmp.ne.s32.totalorder %s39, %s42
      %p51 = scmp.eq.s32.totalorder %s16, 1
      %p52 = por %p50, %p51
      %p53 = scmp.ne.s32.totalorder %s42, %s43
      %p54 = scmp.eq.s32.totalorder %s16, 0
      %p55 = por %p53, %p54
      %p56 = scmp.ne.s32.totalorder %s42, %s43
      %p57 = scmp.eq.s32.totalorder %s17, 1
      %p58 = por %p56, %p57
      %p60 = scmp.ne.s32.totalorder %s43, %s59
      %p61 = scmp.eq.s32.totalorder %s17, 0
      %p62 = por %p60, %p61
      %s63 = sadd.s32 %s18, %s19
      %p64 = scmp.lt.s32.totalorder %s63, 0
      %s65 = scalar_select %p64, %s63, 0
      %s66 = sadd.s32 %s30, %s26
      %p67 = scmp.lt.s32.totalorder %s66, 0
      %s68 = scalar_select %p67, %s66, 0
      %s69 = ssub.s32 %s65, %s68
      %p70 = scmp.eq.s32.totalorder %s69, 0
      %s72 = sadd.s32 %s71, 1
      %s73 = scalar_select %p70, %s71, %s72
      %p76 = pneg %p70
      %p77 = scmp.eq.s32.totalorder %s11, 1
      %p78 = por %p76, %p77
      %p79 = scmp.ne.s32.totalorder %s71, %s74
      %p80 = scmp.eq.s32.totalorder %s11, 0
      %p81 = por %p79, %p80
      %p82 = scmp.ne.s32.totalorder %s71, %s74
      %p83 = scmp.eq.s32.totalorder %s16, 1
      %p84 = por %p82, %p83
      %p85 = scmp.ne.s32.totalorder %s74, %s75
      %p86 = scmp.eq.s32.totalorder %s16, 0
      %p87 = por %p85, %p86
      %p88 = scmp.ne.s32.totalorder %s74, %s75
      %p89 = scmp.eq.s32.totalorder %s17, 1
      %p90 = por %p88, %p89
      %p92 = scmp.ne.s32.totalorder %s75, %s91
      %p93 = scmp.eq.s32.totalorder %s17, 0
      %p94 = por %p92, %p93
      %s95 = ssub.s32 %s18, %s30
      %p96 = scmp.eq.s32.totalorder %s95, 0
      %s98 = sadd.s32 %s97, 1
      %s99 = scalar_select %p96, %s97, %s98
      %p102 = pneg %p96
      %p103 = scmp.eq.s32.totalorder %s11, 1
      %p104 = por %p102, %p103
      %p105 = scmp.ne.s32.totalorder %s97, %s100
      %p106 = scmp.eq.s32.totalorder %s11, 0
      %p107 = por %p105, %p106
      %p108 = scmp.ne.s32.totalorder %s97, %s100
      %p109 = scmp.eq.s32.totalorder %s16, 1
      %p110 = por %p108, %p109
      %p111 = scmp.ne.s32.totalorder %s100, %s101
      %p112 = scmp.eq.s32.totalorder %s16, 0
      %p113 = por %p111, %p112
      %p114 = scmp.ne.s32.totalorder %s100, %s101
      %p115 = scmp.eq.s32.totalorder %s17, 1
      %p116 = por %p114, %p115
      %p118 = scmp.ne.s32.totalorder %s101, %s117
      %p119 = scmp.eq.s32.totalorder %s17, 0
      %p120 = por %p118, %p119
      %p121 = scmp.le.s32.totalorder 1, %s11
      %p122 = scmp.lt.s32.totalorder %s11, 3
      %p123 = pnand %p121, %p122
      %p124 = pneg %p123
      // Predicated region
      $region9: #{tpu_custom_call.1} parent=5 // pred_check
        _
      $region10: #{tpu_custom_call.1} parent=5 // pred_check_branch
        %126 = sbr.rel (%p123) target = $region12
      $region11: #{tpu_custom_call.1} parent=5 // pred_region
        %s127 = ssub.s32 %s11, 1
      $region12: #{tpu_custom_call.1} parent=5 // pred_fallthru
        _
      %p128 = scmp.lt.s32.totalorder %s11, 2
      // Predicated region
      $region13: #{tpu_custom_call.1} parent=5 // pred_check
        %p129 = pneg %p128
      $region14: #{tpu_custom_call.1} parent=5 // pred_check_branch
        %131 = sbr.rel (%p129) target = $region16
      $region15: #{tpu_custom_call.1} parent=5 // pred_region
        // Predicated region
        $region17: #{tpu_custom_call.1} parent=15 // pred_check
          %p132 = pneg %p49
        $region18: #{tpu_custom_call.1} parent=15 // pred_check_branch
          %134 = sbr.rel (%p132) target = $region20
        $region19: #{tpu_custom_call.1} parent=15 // pred_region
          %s135 = sadd.s32 %s18, %s19
          %p136 = scmp.lt.s32.totalorder %s135, 0
          %s137 = scalar_select %p136, %s135, 0
          %s138 = smul.u32 2, %s137
          %p139 = scmp.lt.s32.totalorder %s138, 1
          %s140 = scalar_select %p139, %s138, 1
          %s141 = smul.addr %s140, 8
          %s142 = scalar_lea.vmem %s0, %s141
          %s143 = sadd.s32 %s18, %s19
          %p144 = scmp.lt.s32.totalorder %s143, 0
          %s145 = scalar_select %p144, %s143, 0
          %s146 = smul.u32 2, %s145
        $region20: #{tpu_custom_call.1} parent=15 // pred_fallthru
          _
        // Predicated region
        $region21: #{tpu_custom_call.1} parent=15 // pred_check
          %p147 = pneg %p81
        $region22: #{tpu_custom_call.1} parent=15 // pred_check_branch
          %149 = sbr.rel (%p147) target = $region24
        $region23: #{tpu_custom_call.1} parent=15 // pred_region
          %s150 = sadd.s32 %s18, %s19
          %p151 = scmp.lt.s32.totalorder %s150, 0
          %s152 = scalar_select %p151, %s150, 0
          %s153 = smul.u32 2, %s152
          %p154 = scmp.lt.s32.totalorder %s153, 1
          %s155 = scalar_select %p154, %s153, 1
          %s156 = smul.addr %s155, 8
          %s157 = scalar_lea.vmem %s1, %s156
          %s158 = sadd.s32 %s18, %s19
          %p159 = scmp.lt.s32.totalorder %s158, 0
          %s160 = scalar_select %p159, %s158, 0
          %s161 = smul.u32 2, %s160
        $region24: #{tpu_custom_call.1} parent=15 // pred_fallthru
          _
      $region16: #{tpu_custom_call.1} parent=5 // pred_fallthru
        _
      %p162 = scmp.le.s32.totalorder 1, %s11
      %p163 = scmp.lt.s32.totalorder %s11, 3
      %p164 = pnand %p162, %p163
      %p165 = pneg %p164
      // Predicated region
      $region25: #{tpu_custom_call.1} parent=5 // pred_check
        _
      $region26: #{tpu_custom_call.1} parent=5 // pred_check_branch
        %167 = sbr.rel (%p164) target = $region28
      $region27: #{tpu_custom_call.1} parent=5 // pred_region
        %s168 = ssub.s32 %s11, 1
        %s169 = sadd.s32 %s20, %s21
        %p170 = scmp.lt.s32.totalorder %s169, 0
        %s171 = scalar_select %p170, %s169, 0
        %s172 = smul.u32 2, %s171
        %p173 = scmp.lt.s32.totalorder %s172, 1
        %s174 = scalar_select %p173, %s172, 1
        %s175 = smul.addr %s174, 8
        %s176 = scalar_lea.vmem %s0, %s175
        %p177 = pneg %p55
        %p178 = pneg %p52
        %s179 = sadd.s32 %s20, %s21
        %p180 = scmp.lt.s32.totalorder %s179, 0
        %s181 = scalar_select %p180, %s179, 0
        %s182 = smul.u32 2, %s181
        %p183 = scmp.lt.s32.totalorder %s182, 1
        %s184 = scalar_select %p183, %s182, 1
        %s185 = smul.addr %s184, 8
        %s186 = scalar_lea.vmem %s1, %s185
        %p187 = pneg %p87
        %p188 = pneg %p84
        %p189 = pneg %p113
        %p190 = pneg %p110
        %s191 = sand.u32 %s100, 1
        %s192 = scalar_lea.sflag [#allocation4], %s191
        %s193 = sand.u32 %s100, 1
        %s194 = smul.addr %s193, 8
        %s195 = scalar_lea.vmem [#allocation3], %s194
        %s196 = sadd.s32 %s20, %s21
        %p197 = scmp.lt.s32.totalorder %s196, 0
        %s198 = scalar_select %p197, %s196, 0
        %s199 = smul.u32 2, %s198
        %p200 = scmp.lt.s32.totalorder %s199, 1
        %s201 = scalar_select %p200, %s199, 1
        %s202 = smul.addr %s201, 8
        %s203 = scalar_lea.vmem %s0, %s202
        %s204 = sadd.s32 %s20, %s21
        %p205 = scmp.lt.s32.totalorder %s204, 0
        %s206 = scalar_select %p205, %s204, 0
        %s207 = smul.u32 2, %s206
        %s208 = sadd.s32 %s20, %s21
        %p209 = scmp.lt.s32.totalorder %s208, 0
        %s210 = scalar_select %p209, %s208, 0
        %s211 = smul.u32 2, %s210
        %p212 = scmp.lt.s32.totalorder %s211, 1
        %s213 = scalar_select %p212, %s211, 1
        %s214 = smul.addr %s213, 8
        %s215 = scalar_lea.vmem %s1, %s214
        %s216 = sadd.s32 %s20, %s21
        %p217 = scmp.lt.s32.totalorder %s216, 0
        %s218 = scalar_select %p217, %s216, 0
        %s219 = smul.u32 2, %s218
        %p220 = scmp.eq.s32.totalorder %s21, 0
        // Predicated region
        $region29: #{tpu_custom_call.1} parent=27 // pred_check
          %p221 = pneg %p220
        $region30: #{tpu_custom_call.1} parent=27 // pred_check_branch
          %223 = sbr.rel (%p221) target = $region32
        $region31: #{tpu_custom_call.1} parent=27 // pred_region
          %vm224 = vcmask 0
          %225 = vst.msk [vmem:[#allocation2] sm:$0x1] %vm224, 0.0
        $region32: #{tpu_custom_call.1} parent=27 // pred_fallthru
          _
        %v226 = vld [vmem:[%s203] sm:$0xff]
        %v227 = vld [vmem:[%s203 + $0x8] sm:$0xff]
        %v228 = vld [vmem:[%s215] sm:$0xff]
        %v229 = vld [vmem:[%s215 + $0x8] sm:$0xff]
        %vm230 = vcmask 261120
        %v231 = vsel %vm230, %v226, -inf
        %232 = vmax.xlane.f32.xlu0 %v231
        %v233 = vpop.xlane.xlu0 %232
        %v234 = vsel %vm230, %v227, -inf
        %235 = vmax.xlane.f32.xlu0 %v234
        %v236 = vpop.xlane.xlu0 %235
        %v237 = vsub.f32 %v226, %v233
        %v238 = vsub.f32 %v227, %v236
        %v239 = vmul.f32 %v237, 1.442695
        %v240 = vpow.pop %v239
        %v241 = vmul.f32 %v238, 1.442695
        %v242 = vpow.pop %v241
        %v243 = vsel %vm230, %v240, 0.0
        %244 = vadd.xlane.f32.xlu0 %v243
        %v245 = vpop.xlane.xlu0 %244
        %v246 = vsel %vm230, %v242, 0.0
        %247 = vadd.xlane.f32.xlu0 %v246
        %v248 = vpop.xlane.xlu0 %247
        %v249 = vlaneseq
        %v250 = vand.u32 %v249, 127
        %251 = vset.pattern.permute.xlu0 0
        %252 = vperm.xlu0 %251, %v228
        %v253 = vpop.permute.xlu0 %252
        %254 = vset.pattern.permute.xlu0 0
        %255 = vperm.xlu0 %254, %v229
        %v256 = vpop.permute.xlu0 %255
        %vm257 = vcmp.eq.s32.totalorder %v250, %v253
        %vm258 = vcmp.eq.s32.totalorder %v250, %v256
        %v259 = vsel %vm257, %v240, 0.0
        %v260 = vsel %vm258, %v242, 0.0
        %v261 = vsel %vm230, %v259, 0.0
        %262 = vadd.xlane.f32.xlu0 %v261
        %v263 = vpop.xlane.xlu0 %262
        %v264 = vsel %vm230, %v260, 0.0
        %265 = vadd.xlane.f32.xlu0 %v264
        %v266 = vpop.xlane.xlu0 %265
        %v267 = vrcp.pop %v245
        %v268 = vrcp.pop %v248
        %v269 = vmul.f32 %v263, %v267
        %v270 = vmul.f32 %v266, %v268
        %v271 = vsub.f32 1.0, %v269
        %v272 = vsub.f32 1.0, %v270
        %v273 = vmax.f32 %v271, 0.0
        %v274 = vmax.f32 %v272, 0.0
        %v275 = vmul.f32 %v273, %v273
        %v276 = vmul.f32 %v274, %v274
        %v277 = vmul.f32 %v275, -1.0
        %v278 = vmul.f32 %v276, -1.0
        %v279 = vadd.f32 %v269, 1e-08
        %v280 = vadd.f32 %v270, 1e-08
        %v281 = vlog2.pop %v279
        %v282 = vmul.f32 %v281, 0.6931472
        %v283 = vlog2.pop %v280
        %v284 = vmul.f32 %v283, 0.6931472
        %v285 = vmul.f32 %v277, %v282
        %v286 = vmul.f32 %v278, %v284
        %v287 = vlaneseq
        %v288 = vshrl.u32 %v287, 7
        %v289 = vadd.s32 %v288, 8
        %s290 = sadd.s32 %s20, %s21
        %s291 = smul.u32 %s290, 16
        %v292 = vstv %s291
        %v293 = vadd.s32 %v292, %v288
        %v294 = vadd.s32 %v292, %v289
        %vm295 = vcmp.lt.s32.totalorder %v293, 16
        %vm296 = vcmp.lt.s32.totalorder %v294, 16
        %v297 = vsel %vm295, %v285, 0.0
        %v298 = vsel %vm296, %v286, 0.0
        %v299 = vld [vmem:[#allocation2] sm:$0x1]
        %v300 = vadd.f32 %v297, %v298
        %v301 = vrot.slane %v300, 4
        %v302 = vadd.f32 %v300, %v301
        %v303 = vrot.slane %v302, 2
        %v304 = vadd.f32 %v302, %v303
        %v305 = vrot.slane %v304, 1
        %v306 = vadd.f32 %v304, %v305
        %v307 = vadd.f32 %v299, %v306
        %vm308 = vcmask 0
        %309 = vst.msk [vmem:[#allocation2] sm:$0x1] %vm308, %v307
        // Predicated region
        $region33: #{tpu_custom_call.1} parent=27 // pred_check
          %p310 = pneg %p220
        $region34: #{tpu_custom_call.1} parent=27 // pred_check_branch
          %312 = sbr.rel (%p310) target = $region36
        $region35: #{tpu_custom_call.1} parent=27 // pred_region
          %v313 = vld [vmem:[#allocation2] sm:$0x1]
          %v315 = vlaneseq
          %v316 = vshrl.u32 %v315, 7
          %v317 = vsub.s32 0, %v316
          %v318 = vrot.slane %v313, %v317
          %319 = vset.pattern.permute.xlu0 0
          %320 = vperm.xlu0 %319, %v318
          %v321 = vpop.permute.xlu0 %320
          %323 = vst [vmem:[%s195] sm:$0xff] %v321
        $region36: #{tpu_custom_call.1} parent=27 // pred_fallthru
          _
        %s324 = sand.u32 %s100, 1
        %s325 = scalar_lea.sflag [#allocation4], %s324
        %s326 = sand.u32 %s100, 1
        %s327 = smul.addr %s326, 8
        %s328 = scalar_lea.vmem [#allocation3], %s327
        // Predicated region
        $region37: #{tpu_custom_call.1} parent=27 // pred_check
          %p329 = pneg %p110
        $region38: #{tpu_custom_call.1} parent=27 // pred_check_branch
          %331 = sbr.rel (%p329) target = $region40
        $region39: #{tpu_custom_call.1} parent=27 // pred_region
          %s333 = ssub.s32 128, 128
          %334 = vsyncadd %s325, %s333
          %s335 = smul.addr %s20, 128
          %s336 = scalar_lea.hbm %s2, %s335
          %s338 = sshll.u32 %s328, 4
          %s339 = int_to_ptr.vmem [resolvable:$true] %s338
          %341 = dma.vmem_to_hbm [thread:$0]  %s339, 128, %s336, %s325
        $region40: #{tpu_custom_call.1} parent=27 // pred_fallthru
          _
      $region28: #{tpu_custom_call.1} parent=5 // pred_fallthru
        _
      %p342 = scmp.le.s32.totalorder 2, %s11
      // Predicated region
      $region41: #{tpu_custom_call.1} parent=5 // pred_check
        %p343 = pneg %p342
      $region42: #{tpu_custom_call.1} parent=5 // pred_check_branch
        %345 = sbr.rel (%p343) target = $region44
      $region43: #{tpu_custom_call.1} parent=5 // pred_region
        %s346 = ssub.s32 %s11, 2
        // Predicated region
        $region45: #{tpu_custom_call.1} parent=43 // pred_check
          %p347 = pneg %p116
        $region46: #{tpu_custom_call.1} parent=43 // pred_check_branch
          %349 = sbr.rel (%p347) target = $region48
        $region47: #{tpu_custom_call.1} parent=43 // pred_region
          %s350 = sand.u32 %s101, 1
          %s351 = scalar_lea.sflag [#allocation4], %s350
          %s352 = sand.u32 %s101, 1
          %s353 = smul.addr %s352, 8
          %s354 = scalar_lea.vmem [#allocation3], %s353
          %355 = dma.done %s351, 128
        $region48: #{tpu_custom_call.1} parent=43 // pred_fallthru
          _
      $region44: #{tpu_custom_call.1} parent=5 // pred_fallthru
        _
    $region6: #{tpu_custom_call.1} parent=1 // loop_footer
      %s15 = sadd.s32 1, %s11
    $region7: #{tpu_custom_call.1} parent=1 // loop_footer_branch
      %10 = sbr.rel target = $region3
    $region8: #{tpu_custom_call.1} parent=1 // loop_exit
      _
    %356 = vsyncpa [#allocation4], 1
    %s357 = scalar_lea.sflag [#allocation4], 1
    %358 = vsyncpa %s357, 1

</llo_original>
